<compile_context>
chip_gen: v6e
topology: v6e:2x2x1
jax: 0.10.0
libtpu: 0.0.40
codegen_flags: <defaults>
</compile_context>

<pallas_src>
import functools

import jax
import jax.numpy as jnp
from jax.experimental import pallas as pl
from jax.experimental.pallas import tpu as pltpu


def _round_up(x, m):
    return ((x + m - 1) // m) * m


# ----------------------------------------------------------------------------- kernel
def _fused_mlp_kernel(x_ref, w_ref, b_ref, o_ref, *, num_layers):
    """x_ref: (tm, P) bf16 row tile; w_ref: (L, P, P) bf16 folded weights;
    b_ref: (L, P) f32 folded bias/shift; o_ref: (tm, P) f32 output tile."""
    h = x_ref[...]                                   # (tm, P) bf16
    y = None
    for l in range(num_layers):                      # static, unrolled layer loop
        y = jnp.dot(h, w_ref[l], preferred_element_type=jnp.float32)  # MXU, f32 acc
        y = y + b_ref[l]                             # f32 epilogue: folded bias + BN shift
        if l < num_layers - 1:
            y = jnp.maximum(y, 0.0)                  # ReLU
            # dropout: identity in eval mode
            h = y.astype(x_ref.dtype)                # back to bf16 for next MXU pass
    o_ref[...] = y.astype(o_ref.dtype)


# ----------------------------------------------------------------------------- host-side prep
def init_mlp_params(key, in_channels, hidden_channels, out_channels, num_layers):
    """Deterministic init matching nn.Linear / nn.BatchNorm1d shapes (fresh init)."""
    params = {"lins": [], "bns": []}
    if num_layers == 1:
        dims = [(in_channels, out_channels)]
    else:
        dims = [(in_channels, hidden_channels)]
        dims += [(hidden_channels, hidden_channels)] * (num_layers - 2)
        dims += [(hidden_channels, out_channels)]
    for (fan_in, fan_out) in dims:
        key, kw, kb = jax.random.split(key, 3)
        bound = 1.0 / jnp.sqrt(fan_in)
        # stored as (in, out) so kernel does x @ W
        w = jax.random.uniform(kw, (fan_in, fan_out), jnp.float32, -bound, bound)
        b = jax.random.uniform(kb, (fan_out,), jnp.float32, -bound, bound)
        params["lins"].append((w, b))
    # BatchNorm1d fresh init: gamma=1, beta=0, running_mean=0, running_var=1
    for _ in range(max(num_layers - 1, 0)):
        h = hidden_channels
        params["bns"].append(
            dict(gamma=jnp.ones((h,), jnp.float32),
                 beta=jnp.zeros((h,), jnp.float32),
                 mean=jnp.zeros((h,), jnp.float32),
                 var=jnp.ones((h,), jnp.float32))
        )
    return params


def prepare_params(params, *, eps=1e-5, lane=128, compute_dtype=jnp.bfloat16):
    """Fold BN+bias into the weights, pad features to a 128 multiple, stack layers.
    Done ONCE per parameter set (hoisted out of the forward pass)."""
    lins = params["lins"]
    bns = params["bns"]
    L = len(lins)
    dims = [w.shape for (w, _) in lins]
    P = _round_up(max(max(fi, fo) for (fi, fo) in dims), lane)

    ws, bs = [], []
    for i, (w, b) in enumerate(lins):
        w = w.astype(jnp.float32)
        b = b.astype(jnp.float32)
        if i < L - 1:  # hidden layer: fold eval-mode BatchNorm into the linear
            bn = bns[i]
            scale = bn["gamma"] / jnp.sqrt(bn["var"] + eps)
            shift = bn["beta"] - bn["mean"] * scale
            w = w * scale[None, :]
            b = b * scale + shift
        wp = jnp.zeros((P, P), jnp.float32).at[: w.shape[0], : w.shape[1]].set(w)
        bp = jnp.zeros((P,), jnp.float32).at[: b.shape[0]].set(b)
        ws.append(wp)
        bs.append(bp)

    return dict(
        w=jnp.stack(ws).astype(compute_dtype),   # (L, P, P) bf16 folded weights
        b=jnp.stack(bs),                         # (L, P)    f32 folded bias/shift
        P=P,
        num_layers=L,
        in_channels=dims[0][0],
        out_channels=dims[-1][1],
        compute_dtype=compute_dtype,
    )


# ----------------------------------------------------------------------------- forward
def make_mlp_forward(prepared, *, tm_target=256):
    """Build a jitted forward: pad -> single fused pallas_call -> slice.
    jit caches per input shape; the pallas kernel itself is a single custom call."""
    L = prepared["num_layers"]
    P = prepared["P"]
    cdt = prepared["compute_dtype"]
    out_channels = prepared["out_channels"]
    w_const = prepared["w"]
    b_const = prepared["b"]

    @jax.jit
    def fwd(w, b, x):
        N, F = x.shape
        # Row tiling: full batch when small, tm_target-row "parallel" tiles when large.
        n8 = _round_up(N, 8)
        if n8 >= tm_target:
            tm = tm_target
            n_pad = _round_up(N, tm)
        else:
            tm = n8
            n_pad = n8

        # Zero-pad rows and features (zeros are inert through matmul/bias/ReLU).
        xp = jnp.zeros((n_pad, P), cdt).at[:N, :F].set(x.astype(cdt))

        kernel = functools.partial(_fused_mlp_kernel, num_layers=L)
        out = pl.pallas_call(
            kernel,
            out_shape=jax.ShapeDtypeStruct((n_pad, P), jnp.float32),
            grid_spec=pltpu.PrefetchScalarGridSpec(
                num_scalar_prefetch=0,
                grid=(n_pad // tm,),
                in_specs=[
                    pl.BlockSpec((tm, P), lambda i: (i, 0)),        # activation row tile
                    pl.BlockSpec((L, P, P), lambda i: (0, 0, 0)),   # folded weights, VMEM-resident
                    pl.BlockSpec((L, P), lambda i: (0, 0)),         # folded biases
                ],
                out_specs=pl.BlockSpec((tm, P), lambda i: (i, 0)),
            ),
            compiler_params=pltpu.CompilerParams(
                dimension_semantics=("parallel",),
            ),
        )(xp, w, b)
        return out[:N, :out_channels]

    return functools.partial(fwd, w_const, b_const)


# ----------------------------------------------------------------------------- references
def mlp_reference_f32(params, x, *, eps=1e-5):
    """Pure-f32 reference of the PyTorch module in eval mode."""
    lins = params["lins"]
    bns = params["bns"]
    for i, (w, b) in enumerate(lins[:-1]):
        x = x @ w + b
        bn = bns[i]
        x = (x - bn["mean"]) / jnp.sqrt(bn["var"] + eps) * bn["gamma"] + bn["beta"]
        x = jnp.maximum(x, 0.0)
    w, b = lins[-1]
    return x @ w + b


def mlp_reference_prepared(prepared, x):
    """Reference mirroring the kernel numerics (bf16 folded weights, f32 accumulation)."""
    L = prepared["num_layers"]
    P = prepared["P"]
    cdt = prepared["compute_dtype"]
    N, F = x.shape
    h = jnp.zeros((N, P), cdt).at[:, :F].set(x.astype(cdt))
    y = None
    for l in range(L):
        y = jnp.dot(h, prepared["w"][l], preferred_element_type=jnp.float32)
        y = y + prepared["b"][l]
        if l < L - 1:
            y = jnp.maximum(y, 0.0)
            h = y.astype(cdt)
    return y[:, : prepared["out_channels"]]


# ----------------------------------------------------------------------------- main
if __name__ == "__main__":
    key = jax.random.PRNGKey(0)
    k_param, k_x = jax.random.split(key)

    N = 64               # number of nodes / rows
    in_channels = 32
    hidden_channels = 64
    out_channels = 16
    num_layers = 3

    params = init_mlp_params(k_param, in_channels, hidden_channels,
                             out_channels, num_layers)
    x = jax.random.normal(k_x, (N, in_channels), jnp.float32)

    prepared = prepare_params(params)          # fold BN/bias + pad + stack, once
    forward = make_mlp_forward(prepared)       # jitted pad -> fused kernel -> slice
    out = forward(x)
    out = jax.block_until_ready(out)

    assert out.shape == (N, out_channels), out.shape

    # Tight check vs. a reference with identical (bf16-folded) numerics.
    ref_bf16 = mlp_reference_prepared(prepared, x)
    err_bf16 = float(jnp.max(jnp.abs(out - ref_bf16)))
    assert jnp.allclose(out, ref_bf16, atol=2e-3, rtol=2e-3), err_bf16

    # Sanity check vs. the pure-f32 module semantics (looser: bf16 weights/activations).
    ref_f32 = mlp_reference_f32(params, x)
    err_f32 = float(jnp.max(jnp.abs(out - ref_f32)))
    assert jnp.allclose(out, ref_f32, atol=5e-2, rtol=5e-2), err_f32

    print("KERNEL_OK")
</pallas_src>

<mosaic_0001>
module attributes {stable_mosaic.version = 11 : i64} {
  func.func @_fused_mlp_kernel(%arg0: i32, %arg1: memref<64x128xbf16, #tpu.memory_space<vmem>>, %arg2: memref<3x128x128xbf16, #tpu.memory_space<vmem>>, %arg3: memref<3x128xf32, #tpu.memory_space<vmem>>, %arg4: memref<64x128xf32, #tpu.memory_space<vmem>>) attributes {dimension_semantics = [#tpu.dimension_semantics<parallel>], iteration_bounds = array<i64: 1>, scalar_prefetch = 0 : i64, scratch_operands = 0 : i64, tpu.core_type = #tpu.core_type<tc>, window_params = [{transform_indices = @transform_0, window_bounds = array<i64: 64, 128>}, {pipeline_mode = #tpu.pipeline_mode<synchronous>, transform_indices = @transform_1, window_bounds = array<i64: 3, 128, 128>}, {pipeline_mode = #tpu.pipeline_mode<synchronous>, transform_indices = @transform_2, window_bounds = array<i64: 3, 128>}, {transform_indices = @transform_3, window_bounds = array<i64: 64, 128>}]} {
    %c0 = arith.constant 0 : index
    %c0_0 = arith.constant 0 : index
    %0 = vector.load %arg1[%c0, %c0_0] : memref<64x128xbf16, #tpu.memory_space<vmem>>, vector<64x128xbf16>
    %c0_1 = arith.constant 0 : index
    %c0_2 = arith.constant 0 : index
    %c0_3 = arith.constant 0 : index
    %1 = vector.load %arg2[%c0_1, %c0_2, %c0_3] : memref<3x128x128xbf16, #tpu.memory_space<vmem>>, vector<1x128x128xbf16>
    %2 = vector.shape_cast %1 : vector<1x128x128xbf16> to vector<128x128xbf16>
    %cst = arith.constant dense<0.000000e+00> : vector<64x128xf32>
    %3 = tpu.matmul %0, %2, %cst {dimension_numbers = #tpu.dot_dimension_numbers<[1], [0], [0], [1], [0, 0, 1, 1], [], []>} : vector<64x128xbf16>, vector<128x128xbf16>, vector<64x128xf32> -> vector<64x128xf32>
    %c0_4 = arith.constant 0 : index
    %c0_5 = arith.constant 0 : index
    %4 = vector.load %arg3[%c0_4, %c0_5] : memref<3x128xf32, #tpu.memory_space<vmem>>, vector<1x128xf32>
    %5 = vector.shape_cast %4 : vector<1x128xf32> to vector<128xf32>
    %6 = vector.shape_cast %5 : vector<128xf32> to vector<1x128xf32>
    %7 = vector.broadcast %6 : vector<1x128xf32> to vector<64x128xf32>
    %8 = arith.addf %3, %7 : vector<64x128xf32>
    %cst_6 = arith.constant 0.000000e+00 : f32
    %9 = vector.broadcast %cst_6 : f32 to vector<64x128xf32>
    %10 = arith.maximumf %8, %9 : vector<64x128xf32>
    %11 = arith.truncf %10 : vector<64x128xf32> to vector<64x128xbf16>
    %c1 = arith.constant 1 : index
    %c0_7 = arith.constant 0 : index
    %c0_8 = arith.constant 0 : index
    %12 = vector.load %arg2[%c1, %c0_7, %c0_8] : memref<3x128x128xbf16, #tpu.memory_space<vmem>>, vector<1x128x128xbf16>
    %13 = vector.shape_cast %12 : vector<1x128x128xbf16> to vector<128x128xbf16>
    %cst_9 = arith.constant dense<0.000000e+00> : vector<64x128xf32>
    %14 = tpu.matmul %11, %13, %cst_9 {dimension_numbers = #tpu.dot_dimension_numbers<[1], [0], [0], [1], [0, 0, 1, 1], [], []>} : vector<64x128xbf16>, vector<128x128xbf16>, vector<64x128xf32> -> vector<64x128xf32>
    %c1_10 = arith.constant 1 : index
    %c0_11 = arith.constant 0 : index
    %15 = vector.load %arg3[%c1_10, %c0_11] : memref<3x128xf32, #tpu.memory_space<vmem>>, vector<1x128xf32>
    %16 = vector.shape_cast %15 : vector<1x128xf32> to vector<128xf32>
    %17 = vector.shape_cast %16 : vector<128xf32> to vector<1x128xf32>
    %18 = vector.broadcast %17 : vector<1x128xf32> to vector<64x128xf32>
    %19 = arith.addf %14, %18 : vector<64x128xf32>
    %cst_12 = arith.constant 0.000000e+00 : f32
    %20 = vector.broadcast %cst_12 : f32 to vector<64x128xf32>
    %21 = arith.maximumf %19, %20 : vector<64x128xf32>
    %22 = arith.truncf %21 : vector<64x128xf32> to vector<64x128xbf16>
    %c2 = arith.constant 2 : index
    %c0_13 = arith.constant 0 : index
    %c0_14 = arith.constant 0 : index
    %23 = vector.load %arg2[%c2, %c0_13, %c0_14] : memref<3x128x128xbf16, #tpu.memory_space<vmem>>, vector<1x128x128xbf16>
    %24 = vector.shape_cast %23 : vector<1x128x128xbf16> to vector<128x128xbf16>
    %cst_15 = arith.constant dense<0.000000e+00> : vector<64x128xf32>
    %25 = tpu.matmul %22, %24, %cst_15 {dimension_numbers = #tpu.dot_dimension_numbers<[1], [0], [0], [1], [0, 0, 1, 1], [], []>} : vector<64x128xbf16>, vector<128x128xbf16>, vector<64x128xf32> -> vector<64x128xf32>
    %c2_16 = arith.constant 2 : index
    %c0_17 = arith.constant 0 : index
    %26 = vector.load %arg3[%c2_16, %c0_17] : memref<3x128xf32, #tpu.memory_space<vmem>>, vector<1x128xf32>
    %27 = vector.shape_cast %26 : vector<1x128xf32> to vector<128xf32>
    %28 = vector.shape_cast %27 : vector<128xf32> to vector<1x128xf32>
    %29 = vector.broadcast %28 : vector<1x128xf32> to vector<64x128xf32>
    %30 = arith.addf %25, %29 : vector<64x128xf32>
    %c0_18 = arith.constant 0 : index
    %c0_19 = arith.constant 0 : index
    %31 = vector.load %arg4[%c0_18, %c0_19] : memref<64x128xf32, #tpu.memory_space<vmem>>, vector<64x128xf32>
    tpu.vector_store %arg4[%c0_18, %c0_19], %30 {strides = array<i32>} : memref<64x128xf32, #tpu.memory_space<vmem>>, vector<64x128xf32>,
    return
  }
  func.func @transform_0(%arg0: i32) -> (i32, i32) {
    %c0_i32 = arith.constant 0 : i32
    %c0_i32_0 = arith.constant 0 : i32
    return %arg0, %c0_i32 : i32, i32
  }
  func.func @transform_1(%arg0: i32) -> (i32, i32, i32) {
    %c0_i32 = arith.constant 0 : i32
    %c0_i32_0 = arith.constant 0 : i32
    %c0_i32_1 = arith.constant 0 : i32
    %c0_i32_2 = arith.constant 0 : i32
    return %c0_i32, %c0_i32_0, %c0_i32_1 : i32, i32, i32
  }
  func.func @transform_2(%arg0: i32) -> (i32, i32) {
    %c0_i32 = arith.constant 0 : i32
    %c0_i32_0 = arith.constant 0 : i32
    %c0_i32_1 = arith.constant 0 : i32
    return %c0_i32, %c0_i32_0 : i32, i32
  }
  func.func @transform_3(%arg0: i32) -> (i32, i32) {
    %c0_i32 = arith.constant 0 : i32
    %c0_i32_0 = arith.constant 0 : i32
    return %arg0, %c0_i32 : i32, i32
  }
}

</mosaic_0001>

<llo_original>
// kernel: fwd.1
$region0: #{fwd.1}
  #allocation0 [shape = 'u32[]', space=smem, size = 0x4, offset = 0x4, fixed_abs, tag = 'smem constant byte address 0x4 - core index']
  #allocation1 [shape = 'u32[144,128]{1,0:T(1,128)}', space=vmem, size = 0x12000, scoped, tag = 'internal scratch']
  %s0 = inlined_call_operand.vmem [shape: bf16[64,128], index: 0, kind: input, shape index: {}]
  %s1 = inlined_call_operand.vmem [shape: bf16[3,128,128], index: 1, kind: input, shape index: {}]
  %s2 = inlined_call_operand.vmem [shape: f32[3,128], index: 2, kind: input, shape index: {}]
  %s3 = inlined_call_operand.vmem [shape: f32[64,128], index: 3, kind: output, shape index: {}]
  %s4 = sld [smem:[#allocation0]]
  $region22: #{fwd.1} parent=0
    _
  %s6 = ssub.s32 1, %s4
  %s7 = scalar_select 0, %s6, %s4
  // Predicated region
  $region2: #{fwd.1} parent=0 // pred_check
    _
  $region3: #{fwd.1} parent=0 // pred_check_branch
    %9 = sbr.rel (0) target = $region5
  $region4: #{fwd.1} parent=0 // pred_region
    _
  $region5: #{fwd.1} parent=0 // pred_fallthru
    _
  // Predicated region
  $region6: #{fwd.1} parent=0 // pred_check
    _
  $region7: #{fwd.1} parent=0 // pred_check_branch
    %11 = sbr.rel (0) target = $region9
  $region8: #{fwd.1} parent=0 // pred_region
    _
  $region9: #{fwd.1} parent=0 // pred_fallthru
    _
  // Predicated region
  $region10: #{fwd.1} parent=0 // pred_check
    _
  $region11: #{fwd.1} parent=0 // pred_check_branch
    %13 = sbr.rel (0) target = $region13
  $region12: #{fwd.1} parent=0 // pred_region
    _
  $region13: #{fwd.1} parent=0 // pred_fallthru
    _
  %v15 = vld [vmem:[%s0] sm:$0xf]
  %v16 = vld [vmem:[%s0 + $0x4] sm:$0xf]
  %v17 = vld [vmem:[%s0 + $0x8] sm:$0xf]
  %v18 = vld [vmem:[%s0 + $0xc] sm:$0xf]
  %v19 = vld [vmem:[%s0 + $0x10] sm:$0xf]
  %v20 = vld [vmem:[%s0 + $0x14] sm:$0xf]
  %v21 = vld [vmem:[%s0 + $0x18] sm:$0xf]
  %v22 = vld [vmem:[%s0 + $0x1c] sm:$0xf]
  %v23 = vld [vmem:[%s1] sm:$0xf]
  %v24 = vld [vmem:[%s1 + $0x4] sm:$0xf]
  %v25 = vld [vmem:[%s1 + $0x8] sm:$0xf]
  %v26 = vld [vmem:[%s1 + $0xc] sm:$0xf]
  %v27 = vld [vmem:[%s1 + $0x10] sm:$0xf]
  %v28 = vld [vmem:[%s1 + $0x14] sm:$0xf]
  %v29 = vld [vmem:[%s1 + $0x18] sm:$0xf]
  %v30 = vld [vmem:[%s1 + $0x1c] sm:$0xf]
  %v31 = vld [vmem:[%s1 + $0x20] sm:$0xf]
  %v32 = vld [vmem:[%s1 + $0x24] sm:$0xf]
  %v33 = vld [vmem:[%s1 + $0x28] sm:$0xf]
  %v34 = vld [vmem:[%s1 + $0x2c] sm:$0xf]
  %v35 = vld [vmem:[%s1 + $0x30] sm:$0xf]
  %v36 = vld [vmem:[%s1 + $0x34] sm:$0xf]
  %v37 = vld [vmem:[%s1 + $0x38] sm:$0xf]
  %v38 = vld [vmem:[%s1 + $0x3c] sm:$0xf]
  %v39 = vld [vmem:[%s2] sm:$0x1]
  %v40 = vlaneseq
  %v41 = vshrl.u32 %v40, 7
  %v42 = vsub.s32 0, %v41
  %v43 = vrot.slane %v39, %v42
  %v52 = vunpack.c.l.b16 %v15
  %v53 = vunpack.c.l.b16 %v16
  %v54 = vunpack.c.l.b16 %v17
  %v55 = vunpack.c.l.b16 %v18
  %v56 = vunpack.c.l.b16 %v19
  %v57 = vunpack.c.l.b16 %v20
  %v58 = vunpack.c.l.b16 %v21
  %v59 = vunpack.c.l.b16 %v22
  %v60 = vpack.c.b16 %v53, %v52
  %v61 = vpack.c.b16 %v55, %v54
  %v62 = vpack.c.b16 %v57, %v56
  %v63 = vpack.c.b16 %v59, %v58
  %v84 = vunpack.c.l.b16 %v23
  %v85 = vunpack.c.l.b16 %v24
  %v86 = vunpack.c.l.b16 %v25
  %v87 = vunpack.c.l.b16 %v26
  %v88 = vunpack.c.l.b16 %v27
  %v89 = vunpack.c.l.b16 %v28
  %v90 = vunpack.c.l.b16 %v29
  %v91 = vunpack.c.l.b16 %v30
  %v92 = vunpack.c.l.b16 %v31
  %v93 = vunpack.c.l.b16 %v32
  %v94 = vunpack.c.l.b16 %v33
  %v95 = vunpack.c.l.b16 %v34
  %v96 = vunpack.c.l.b16 %v35
  %v97 = vunpack.c.l.b16 %v36
  %v98 = vunpack.c.l.b16 %v37
  %v99 = vunpack.c.l.b16 %v38
  %v100 = vpack.c.b16 %v85, %v84
  %v101 = vpack.c.b16 %v87, %v86
  %v102 = vpack.c.b16 %v89, %v88
  %v103 = vpack.c.b16 %v91, %v90
  %v104 = vpack.c.b16 %v93, %v92
  %v105 = vpack.c.b16 %v95, %v94
  %v106 = vpack.c.b16 %v97, %v96
  %v107 = vpack.c.b16 %v99, %v98
  %116 = vmatprep.subr.bf16.mxu0 0
  %117 = vmatpush1.bf16.msra.mxu0 %v107
  %118 = vmatprep.subr.bf16.mxu0 0
  %119 = vmatpush1.bf16.msra.mxu0 %v106
  %120 = vmatprep.subr.bf16.mxu0 0
  %121 = vmatpush1.bf16.msra.mxu0 %v105
  %122 = vmatprep.subr.bf16.mxu0 0
  %123 = vmatpush1.bf16.msra.mxu0 %v104
  %124 = vmatprep.subr.bf16.mxu0 0
  %125 = vmatpush1.bf16.msra.mxu0 %v103
  %126 = vmatprep.subr.bf16.mxu0 0
  %127 = vmatpush1.bf16.msra.mxu0 %v102
  %128 = vmatprep.subr.bf16.mxu0 0
  %129 = vmatpush1.bf16.msra.mxu0 %v101
  %130 = vmatprep.subr.bf16.mxu0 0
  %131 = vmatpush1.bf16.msra.mxu0 %v100
  %132 = vmatprep.subr.bf16.mxu0 0
  %133 = vmatpush2.bf16.msra.mxu0 0
  %134 = vmatprep.subr.bf16.mxu0 0
  %135 = vmatpush2.bf16.msra.mxu0 0
  %136 = vmatprep.subr.bf16.mxu0 0
  %137 = vmatpush2.bf16.msra.mxu0 0
  %138 = vmatprep.subr.bf16.mxu0 0
  %139 = vmatpush2.bf16.msra.mxu0 0
  %140 = vmatprep.subr.bf16.mxu0 0
  %141 = vmatpush2.bf16.msra.mxu0 0
  %142 = vmatprep.subr.bf16.mxu0 0
  %143 = vmatpush2.bf16.msra.mxu0 0
  %144 = vmatprep.subr.bf16.mxu0 0
  %145 = vmatpush2.bf16.msra.mxu0 0
  %146 = vmatprep.subr.bf16.mxu0 0
  %147 = vmatpush2.bf16.msra.mxu0 0
  %148 = vmatprep.mubr.bf16.mxu0 0
  %149 = vmatmul.mubr.bf16.gmra.mxu0 %v60
  %v150 = vpop.f32.mrf.mxu0
  %v151 = vadd.f32 %v43, %v150
  %v152 = vpop.f32.mrf.mxu0
  %v153 = vpop.f32.mrf.mxu0
  %v154 = vadd.f32 %v43, %v153
  %v155 = vpop.f32.mrf.mxu0
  %156 = vmatprep.mubr.bf16.mxu0 0
  %157 = vmatmul.mubr.bf16.gmra.mxu0 %v61
  %v158 = vpop.f32.mrf.mxu0
  %v159 = vadd.f32 %v43, %v158
  %v160 = vpop.f32.mrf.mxu0
  %v161 = vpop.f32.mrf.mxu0
  %v162 = vadd.f32 %v43, %v161
  %v163 = vpop.f32.mrf.mxu0
  %164 = vmatprep.mubr.bf16.mxu0 0
  %165 = vmatmul.mubr.bf16.gmra.mxu0 %v62
  %v166 = vpop.f32.mrf.mxu0
  %v167 = vadd.f32 %v43, %v166
  %v168 = vpop.f32.mrf.mxu0
  %v169 = vpop.f32.mrf.mxu0
  %v170 = vadd.f32 %v43, %v169
  %v171 = vpop.f32.mrf.mxu0
  %172 = vmatprep.mubr.bf16.mxu0 0
  %173 = vmatmul.mubr.bf16.gmra.mxu0 %v63
  %v174 = vpop.f32.mrf.mxu0
  %v175 = vadd.f32 %v43, %v174
  %v176 = vpop.f32.mrf.mxu0
  %v177 = vpop.f32.mrf.mxu0
  %v178 = vadd.f32 %v43, %v177
  %v179 = vpop.f32.mrf.mxu0
  %180 = vdwg.mxu0
  %v181 = vmax.f32 %v151, 0.0
  %v182 = vmax.f32 %v154, 0.0
  %v183 = vmax.f32 %v159, 0.0
  %v184 = vmax.f32 %v162, 0.0
  %v185 = vmax.f32 %v167, 0.0
  %v186 = vmax.f32 %v170, 0.0
  %v187 = vmax.f32 %v175, 0.0
  %v188 = vmax.f32 %v178, 0.0
  %v189 = vpack.c.bf16 %v182, %v181
  %v190 = vpack.c.bf16 %v184, %v183
  %v191 = vpack.c.bf16 %v186, %v185
  %v192 = vpack.c.bf16 %v188, %v187
  %s193 = scalar_lea.vmem %s1, 64
  %v194 = vld [vmem:[%s193] sm:$0xf]
  %v195 = vld [vmem:[%s193 + $0x4] sm:$0xf]
  %v196 = vld [vmem:[%s193 + $0x8] sm:$0xf]
  %v197 = vld [vmem:[%s193 + $0xc] sm:$0xf]
  %v198 = vld [vmem:[%s193 + $0x10] sm:$0xf]
  %v199 = vld [vmem:[%s193 + $0x14] sm:$0xf]
  %v200 = vld [vmem:[%s193 + $0x18] sm:$0xf]
  %v201 = vld [vmem:[%s193 + $0x1c] sm:$0xf]
  %v202 = vld [vmem:[%s193 + $0x20] sm:$0xf]
  %v203 = vld [vmem:[%s193 + $0x24] sm:$0xf]
  %v204 = vld [vmem:[%s193 + $0x28] sm:$0xf]
  %v205 = vld [vmem:[%s193 + $0x2c] sm:$0xf]
  %v206 = vld [vmem:[%s193 + $0x30] sm:$0xf]
  %v207 = vld [vmem:[%s193 + $0x34] sm:$0xf]
  %v208 = vld [vmem:[%s193 + $0x38] sm:$0xf]
  %v209 = vld [vmem:[%s193 + $0x3c] sm:$0xf]
  %v210 = vld [vmem:[%s2 + $0x1] sm:$0x1]
  %v211 = vlaneseq
  %v212 = vshrl.u32 %v211, 7
  %v213 = vsub.s32 0, %v212
  %v214 = vrot.slane %v210, %v213
  %v231 = vunpack.c.l.b16 %v194
  %v232 = vunpack.c.l.b16 %v195
  %v233 = vunpack.c.l.b16 %v196
  %v234 = vunpack.c.l.b16 %v197
  %v235 = vunpack.c.l.b16 %v198
  %v236 = vunpack.c.l.b16 %v199
  %v237 = vunpack.c.l.b16 %v200
  %v238 = vunpack.c.l.b16 %v201
  %v239 = vunpack.c.l.b16 %v202
  %v240 = vunpack.c.l.b16 %v203
  %v241 = vunpack.c.l.b16 %v204
  %v242 = vunpack.c.l.b16 %v205
  %v243 = vunpack.c.l.b16 %v206
  %v244 = vunpack.c.l.b16 %v207
  %v245 = vunpack.c.l.b16 %v208
  %v246 = vunpack.c.l.b16 %v209
  %v247 = vpack.c.b16 %v232, %v231
  %v248 = vpack.c.b16 %v234, %v233
  %v249 = vpack.c.b16 %v236, %v235
  %v250 = vpack.c.b16 %v238, %v237
  %v251 = vpack.c.b16 %v240, %v239
  %v252 = vpack.c.b16 %v242, %v241
  %v253 = vpack.c.b16 %v244, %v243
  %v254 = vpack.c.b16 %v246, %v245
  %263 = vmatprep.subr.bf16.mxu0 0
  %264 = vmatpush1.bf16.msra.mxu0 %v254
  %265 = vmatprep.subr.bf16.mxu0 0
  %266 = vmatpush1.bf16.msra.mxu0 %v253
  %267 = vmatprep.subr.bf16.mxu0 0
  %268 = vmatpush1.bf16.msra.mxu0 %v252
  %269 = vmatprep.subr.bf16.mxu0 0
  %270 = vmatpush1.bf16.msra.mxu0 %v251
  %271 = vmatprep.subr.bf16.mxu0 0
  %272 = vmatpush1.bf16.msra.mxu0 %v250
  %273 = vmatprep.subr.bf16.mxu0 0
  %274 = vmatpush1.bf16.msra.mxu0 %v249
  %275 = vmatprep.subr.bf16.mxu0 0
  %276 = vmatpush1.bf16.msra.mxu0 %v248
  %277 = vmatprep.subr.bf16.mxu0 0
  %278 = vmatpush1.bf16.msra.mxu0 %v247
  %279 = vmatprep.subr.bf16.mxu0 0
  %280 = vmatpush2.bf16.msra.mxu0 0
  %281 = vmatprep.subr.bf16.mxu0 0
  %282 = vmatpush2.bf16.msra.mxu0 0
  %283 = vmatprep.subr.bf16.mxu0 0
  %284 = vmatpush2.bf16.msra.mxu0 0
  %285 = vmatprep.subr.bf16.mxu0 0
  %286 = vmatpush2.bf16.msra.mxu0 0
  %287 = vmatprep.subr.bf16.mxu0 0
  %288 = vmatpush2.bf16.msra.mxu0 0
  %289 = vmatprep.subr.bf16.mxu0 0
  %290 = vmatpush2.bf16.msra.mxu0 0
  %291 = vmatprep.subr.bf16.mxu0 0
  %292 = vmatpush2.bf16.msra.mxu0 0
  %293 = vmatprep.subr.bf16.mxu0 0
  %294 = vmatpush2.bf16.msra.mxu0 0
  %295 = vmatprep.mubr.bf16.mxu0 0
  %296 = vmatmul.mubr.bf16.gmra.mxu0 %v189
  %v297 = vpop.f32.mrf.mxu0
  %v298 = vadd.f32 %v214, %v297
  %v299 = vpop.f32.mrf.mxu0
  %v300 = vpop.f32.mrf.mxu0
  %v301 = vadd.f32 %v214, %v300
  %v302 = vpop.f32.mrf.mxu0
  %303 = vmatprep.mubr.bf16.mxu0 0
  %304 = vmatmul.mubr.bf16.gmra.mxu0 %v190
  %v305 = vpop.f32.mrf.mxu0
  %v306 = vadd.f32 %v214, %v305
  %v307 = vpop.f32.mrf.mxu0
  %v308 = vpop.f32.mrf.mxu0
  %v309 = vadd.f32 %v214, %v308
  %v310 = vpop.f32.mrf.mxu0
  %311 = vmatprep.mubr.bf16.mxu0 0
  %312 = vmatmul.mubr.bf16.gmra.mxu0 %v191
  %v313 = vpop.f32.mrf.mxu0
  %v314 = vadd.f32 %v214, %v313
  %v315 = vpop.f32.mrf.mxu0
  %v316 = vpop.f32.mrf.mxu0
  %v317 = vadd.f32 %v214, %v316
  %v318 = vpop.f32.mrf.mxu0
  %319 = vmatprep.mubr.bf16.mxu0 0
  %320 = vmatmul.mubr.bf16.gmra.mxu0 %v192
  %v321 = vpop.f32.mrf.mxu0
  %v322 = vadd.f32 %v214, %v321
  %v323 = vpop.f32.mrf.mxu0
  %v324 = vpop.f32.mrf.mxu0
  %v325 = vadd.f32 %v214, %v324
  %v326 = vpop.f32.mrf.mxu0
  %327 = vdwg.mxu0
  %v328 = vmax.f32 %v298, 0.0
  %v329 = vmax.f32 %v301, 0.0
  %v330 = vmax.f32 %v306, 0.0
  %v331 = vmax.f32 %v309, 0.0
  %v332 = vmax.f32 %v314, 0.0
  %v333 = vmax.f32 %v317, 0.0
  %v334 = vmax.f32 %v322, 0.0
  %v335 = vmax.f32 %v325, 0.0
  %v336 = vpack.c.bf16 %v329, %v328
  %v337 = vpack.c.bf16 %v331, %v330
  %v338 = vpack.c.bf16 %v333, %v332
  %v339 = vpack.c.bf16 %v335, %v334
  %s340 = scalar_lea.vmem %s1, 128
  %v341 = vld [vmem:[%s340] sm:$0xf]
  %v342 = vld [vmem:[%s340 + $0x4] sm:$0xf]
  %v343 = vld [vmem:[%s340 + $0x8] sm:$0xf]
  %v344 = vld [vmem:[%s340 + $0xc] sm:$0xf]
  %v345 = vld [vmem:[%s340 + $0x10] sm:$0xf]
  %v346 = vld [vmem:[%s340 + $0x14] sm:$0xf]
  %v347 = vld [vmem:[%s340 + $0x18] sm:$0xf]
  %v348 = vld [vmem:[%s340 + $0x1c] sm:$0xf]
  %v349 = vld [vmem:[%s340 + $0x20] sm:$0xf]
  %v350 = vld [vmem:[%s340 + $0x24] sm:$0xf]
  %v351 = vld [vmem:[%s340 + $0x28] sm:$0xf]
  %v352 = vld [vmem:[%s340 + $0x2c] sm:$0xf]
  %v353 = vld [vmem:[%s340 + $0x30] sm:$0xf]
  %v354 = vld [vmem:[%s340 + $0x34] sm:$0xf]
  %v355 = vld [vmem:[%s340 + $0x38] sm:$0xf]
  %v356 = vld [vmem:[%s340 + $0x3c] sm:$0xf]
  %v357 = vld [vmem:[%s2 + $0x2] sm:$0x1]
  %v358 = vlaneseq
  %v359 = vshrl.u32 %v358, 7
  %v360 = vsub.s32 0, %v359
  %v361 = vrot.slane %v357, %v360
  %v378 = vunpack.c.l.b16 %v341
  %v379 = vunpack.c.l.b16 %v342
  %v380 = vunpack.c.l.b16 %v343
  %v381 = vunpack.c.l.b16 %v344
  %v382 = vunpack.c.l.b16 %v345
  %v383 = vunpack.c.l.b16 %v346
  %v384 = vunpack.c.l.b16 %v347
  %v385 = vunpack.c.l.b16 %v348
  %v386 = vunpack.c.l.b16 %v349
  %v387 = vunpack.c.l.b16 %v350
  %v388 = vunpack.c.l.b16 %v351
  %v389 = vunpack.c.l.b16 %v352
  %v390 = vunpack.c.l.b16 %v353
  %v391 = vunpack.c.l.b16 %v354
  %v392 = vunpack.c.l.b16 %v355
  %v393 = vunpack.c.l.b16 %v356
  %v394 = vpack.c.b16 %v379, %v378
  %v395 = vpack.c.b16 %v381, %v380
  %v396 = vpack.c.b16 %v383, %v382
  %v397 = vpack.c.b16 %v385, %v384
  %v398 = vpack.c.b16 %v387, %v386
  %v399 = vpack.c.b16 %v389, %v388
  %v400 = vpack.c.b16 %v391, %v390
  %v401 = vpack.c.b16 %v393, %v392
  %410 = vmatprep.subr.bf16.mxu0 0
  %411 = vmatpush1.bf16.msra.mxu0 %v401
  %412 = vmatprep.subr.bf16.mxu0 0
  %413 = vmatpush1.bf16.msra.mxu0 %v400
  %414 = vmatprep.subr.bf16.mxu0 0
  %415 = vmatpush1.bf16.msra.mxu0 %v399
  %416 = vmatprep.subr.bf16.mxu0 0
  %417 = vmatpush1.bf16.msra.mxu0 %v398
  %418 = vmatprep.subr.bf16.mxu0 0
  %419 = vmatpush1.bf16.msra.mxu0 %v397
  %420 = vmatprep.subr.bf16.mxu0 0
  %421 = vmatpush1.bf16.msra.mxu0 %v396
  %422 = vmatprep.subr.bf16.mxu0 0
  %423 = vmatpush1.bf16.msra.mxu0 %v395
  %424 = vmatprep.subr.bf16.mxu0 0
  %425 = vmatpush1.bf16.msra.mxu0 %v394
  %426 = vmatprep.subr.bf16.mxu0 0
  %427 = vmatpush2.bf16.msra.mxu0 0
  %428 = vmatprep.subr.bf16.mxu0 0
  %429 = vmatpush2.bf16.msra.mxu0 0
  %430 = vmatprep.subr.bf16.mxu0 0
  %431 = vmatpush2.bf16.msra.mxu0 0
  %432 = vmatprep.subr.bf16.mxu0 0
  %433 = vmatpush2.bf16.msra.mxu0 0
  %434 = vmatprep.subr.bf16.mxu0 0
  %435 = vmatpush2.bf16.msra.mxu0 0
  %436 = vmatprep.subr.bf16.mxu0 0
  %437 = vmatpush2.bf16.msra.mxu0 0
  %438 = vmatprep.subr.bf16.mxu0 0
  %439 = vmatpush2.bf16.msra.mxu0 0
  %440 = vmatprep.subr.bf16.mxu0 0
  %441 = vmatpush2.bf16.msra.mxu0 0
  %442 = vmatprep.mubr.bf16.mxu0 0
  %443 = vmatmul.mubr.bf16.gmra.mxu0 %v336
  %v444 = vpop.f32.mrf.mxu0
  %v445 = vadd.f32 %v361, %v444
  %v446 = vpop.f32.mrf.mxu0
  %v447 = vpop.f32.mrf.mxu0
  %v448 = vadd.f32 %v361, %v447
  %v449 = vpop.f32.mrf.mxu0
  %450 = vmatprep.mubr.bf16.mxu0 0
  %451 = vmatmul.mubr.bf16.gmra.mxu0 %v337
  %v452 = vpop.f32.mrf.mxu0
  %v453 = vadd.f32 %v361, %v452
  %v454 = vpop.f32.mrf.mxu0
  %v455 = vpop.f32.mrf.mxu0
  %v456 = vadd.f32 %v361, %v455
  %v457 = vpop.f32.mrf.mxu0
  %458 = vmatprep.mubr.bf16.mxu0 0
  %459 = vmatmul.mubr.bf16.gmra.mxu0 %v338
  %v460 = vpop.f32.mrf.mxu0
  %v461 = vadd.f32 %v361, %v460
  %v462 = vpop.f32.mrf.mxu0
  %v463 = vpop.f32.mrf.mxu0
  %v464 = vadd.f32 %v361, %v463
  %v465 = vpop.f32.mrf.mxu0
  %466 = vmatprep.mubr.bf16.mxu0 0
  %467 = vmatmul.mubr.bf16.gmra.mxu0 %v339
  %v468 = vpop.f32.mrf.mxu0
  %v469 = vadd.f32 %v361, %v468
  %v470 = vpop.f32.mrf.mxu0
  %v471 = vpop.f32.mrf.mxu0
  %v472 = vadd.f32 %v361, %v471
  %v473 = vpop.f32.mrf.mxu0
  %474 = vdwg.mxu0
  %475 = vst [vmem:[%s3] sm:$0xff] %v445
  %476 = vst [vmem:[%s3 + $0x8] sm:$0xff] %v448
  %477 = vst [vmem:[%s3 + $0x10] sm:$0xff] %v453
  %478 = vst [vmem:[%s3 + $0x18] sm:$0xff] %v456
  %479 = vst [vmem:[%s3 + $0x20] sm:$0xff] %v461
  %480 = vst [vmem:[%s3 + $0x28] sm:$0xff] %v464
  %481 = vst [vmem:[%s3 + $0x30] sm:$0xff] %v469
  %482 = vst [vmem:[%s3 + $0x38] sm:$0xff] %v472
  // Predicated region
  $region14: #{fwd.1} parent=0 // pred_check
    _
  $region15: #{fwd.1} parent=0 // pred_check_branch
    %484 = sbr.rel (0) target = $region17
  $region16: #{fwd.1} parent=0 // pred_region
    _
  $region17: #{fwd.1} parent=0 // pred_fallthru
    _
  // Predicated region
  $region18: #{fwd.1} parent=0 // pred_check
    _
  $region19: #{fwd.1} parent=0 // pred_check_branch
    %486 = sbr.rel (0) target = $region21
  $region20: #{fwd.1} parent=0 // pred_region
    _
  $region21: #{fwd.1} parent=0 // pred_fallthru
    _

</llo_original>
